<compile_context>
chip_gen: v6e
topology: v6e:2x2x1
jax: 0.10.0
libtpu: 0.0.40
codegen_flags: <defaults>
</compile_context>

<pallas_src>
import jax
import jax.numpy as jnp
from jax.experimental import pallas as pl
from jax.experimental.pallas import tpu as pltpu

_LANES = 128
_MAX_BLOCK_ROWS = 2048            # 2048 * 128 * 4 B = 1 MiB per buffer
_SMALL_TOTAL_THRESHOLD = 64 * 1024  # below this, fused XLA beats any launch


def _round_up(x, m):
    return ((x + m - 1) // m) * m


def _affine_sigmoid_kernel(wh_ref, bh_ref, x_ref, o_ref):
    # sigmoid(x*w + b) == 0.5*tanh(0.5*(x*w + b)) + 0.5
    #                  == 0.5*tanh(x*(0.5*w) + (0.5*b)) + 0.5
    # wh_ref / bh_ref already hold the pre-halved scalars in SMEM, so the body
    # is one fma-shaped VALU op, one EUP tanh, and one scale/add.
    o_ref[...] = 0.5 * jnp.tanh(x_ref[...] * wh_ref[0] + bh_ref[0]) + 0.5


def conv_transpose3d_1x1_sigmoid(x, weight, bias, *, force_pallas=False):
    """x: (N, C=1, D, H, W). weight: (1,1,1,1,1). bias: (1,)."""
    n, c, d, h, w_dim = x.shape
    assert c == 1 and weight.shape == (1, 1, 1, 1, 1) and bias.shape == (1,)
    total = n * c * d * h * w_dim

    w_scalar = weight.reshape(()).astype(jnp.float32)
    b_scalar = bias.reshape(()).astype(jnp.float32)

    # Fast path: tiny tensors are 100% launch overhead in a custom kernel;
    # let XLA fuse the affine + sigmoid.
    if total < _SMALL_TOTAL_THRESHOLD and not force_pallas:
        return jax.nn.sigmoid(x.astype(jnp.float32) * w_scalar + b_scalar)

    # Lane-dense slab: pad ONLY the <128-element tail, then view as (rows,128).
    rows = -(-total // _LANES)
    tail_pad = rows * _LANES - total
    x_flat = x.reshape(-1).astype(jnp.float32)
    if tail_pad:
        x_flat = jnp.pad(x_flat, (0, tail_pad))
    x2d = x_flat.reshape(rows, _LANES)

    # Row-block sizing:
    #  * block last two dims must be (multiple of 8, 128) or equal full dims
    #  * cap each buffer at 1 MiB (2048 rows); in+out double-buffered ~4 MiB
    #  * >= 2 blocks whenever rows > 8 so v7x's two TensorCores both get work
    #  * `rows` itself is never rounded up: the last grid block may be ragged.
    if rows <= 8:
        block_rows = rows           # single block == full array dims
        num_blocks = 1
    else:
        target_blocks = max(2, -(-rows // _MAX_BLOCK_ROWS))
        block_rows = min(_round_up(-(-rows // target_blocks), 8), _MAX_BLOCK_ROWS)
        num_blocks = -(-rows // block_rows)

    w_half = (0.5 * w_scalar).reshape(1)
    b_half = (0.5 * b_scalar).reshape(1)

    out2d = pl.pallas_call(
        _affine_sigmoid_kernel,
        out_shape=jax.ShapeDtypeStruct((rows, _LANES), jnp.float32),
        grid=(num_blocks,),
        in_specs=[
            pl.BlockSpec(memory_space=pltpu.SMEM),               # 0.5 * weight
            pl.BlockSpec(memory_space=pltpu.SMEM),               # 0.5 * bias
            pl.BlockSpec((block_rows, _LANES), lambda i: (i, 0)),
        ],
        out_specs=pl.BlockSpec((block_rows, _LANES), lambda i: (i, 0)),
        compiler_params=pltpu.CompilerParams(
            dimension_semantics=("parallel",),   # split row-blocks across TCs
            vmem_limit_bytes=32 * 1024 * 1024,   # safe on v5e/v6e/v7x
        ),
        cost_estimate=pl.CostEstimate(
            flops=4 * rows * _LANES,
            transcendentals=rows * _LANES,
            bytes_accessed=2 * rows * _LANES * 4,
        ),
    )(w_half, b_half, x2d)

    out_flat = out2d.reshape(-1)
    if tail_pad:
        out_flat = out_flat[:total]
    return out_flat.reshape(x.shape)


def _reference(x, weight, bias):
    # Pure-JAX reference of the same math.
    v1 = x.astype(jnp.float32) * weight.reshape(()) + bias.reshape(())
    return jax.nn.sigmoid(v1)


if __name__ == "__main__":
    key = jax.random.PRNGKey(0)
    kx, kw, kb, kx2 = jax.random.split(key, 4)

    # Same shape as the PyTorch script: x1 = torch.randn(1, 1, 1, 3, 3)
    x1 = jax.random.normal(kx, (1, 1, 1, 3, 3), dtype=jnp.float32)

    # Deterministic ConvTranspose3d(1,1,1) parameters (fan_in=1 -> U(-1,1)).
    weight = jax.random.uniform(kw, (1, 1, 1, 1, 1), jnp.float32, -1.0, 1.0)
    bias = jax.random.uniform(kb, (1,), jnp.float32, -1.0, 1.0)

    # 1) Spec-sized input through the Pallas kernel (single tiny block).
    out = jax.block_until_ready(
        conv_transpose3d_1x1_sigmoid(x1, weight, bias, force_pallas=True))
    ref = _reference(x1, weight, bias)
    assert out.shape == (1, 1, 1, 3, 3)
    assert jnp.allclose(out, ref, atol=1e-5, rtol=1e-5)

    # 2) Spec-sized input through the default (fused-XLA fast) path.
    out_fast = jax.block_until_ready(conv_transpose3d_1x1_sigmoid(x1, weight, bias))
    assert jnp.allclose(out_fast, ref, atol=1e-6, rtol=1e-6)

    # 3) Slightly larger input exercising the multi-block / ragged-tail path
    #    (total=2442 -> rows=20, block_rows=16, grid=(2,), last block ragged).
    x2 = jax.random.normal(kx2, (1, 1, 2, 33, 37), dtype=jnp.float32)
    out2 = jax.block_until_ready(
        conv_transpose3d_1x1_sigmoid(x2, weight, bias, force_pallas=True))
    ref2 = _reference(x2, weight, bias)
    assert out2.shape == x2.shape
    assert jnp.allclose(out2, ref2, atol=1e-5, rtol=1e-5)

    print("KERNEL_OK")
</pallas_src>

<mosaic_0001>
module attributes {stable_mosaic.version = 11 : i64} {
  func.func @_affine_sigmoid_kernel(%arg0: i32, %arg1: memref<1xf32, #tpu.memory_space<smem>>, %arg2: memref<1xf32, #tpu.memory_space<smem>>, %arg3: memref<1x128xf32, #tpu.memory_space<vmem>>, %arg4: memref<1x128xf32, #tpu.memory_space<vmem>>) attributes {dimension_semantics = [#tpu.dimension_semantics<parallel>], iteration_bounds = array<i64: 1>, scalar_prefetch = 0 : i64, scratch_operands = 0 : i64, tpu.core_type = #tpu.core_type<tc>, window_params = [{transform_indices = @transform_0, window_bounds = array<i64: 1>}, {transform_indices = @transform_1, window_bounds = array<i64: 1>}, {transform_indices = @transform_2, window_bounds = array<i64: 1, 128>}, {transform_indices = @transform_3, window_bounds = array<i64: 1, 128>}]} {
    %c0 = arith.constant 0 : index
    %c0_0 = arith.constant 0 : index
    %0 = vector.load %arg3[%c0, %c0_0] : memref<1x128xf32, #tpu.memory_space<vmem>>, vector<1x128xf32>
    %c0_1 = arith.constant 0 : index
    %1 = memref.load %arg1[%c0_1] : memref<1xf32, #tpu.memory_space<smem>>
    %2 = vector.broadcast %1 : f32 to vector<1x128xf32>
    %3 = arith.mulf %0, %2 : vector<1x128xf32>
    %c0_2 = arith.constant 0 : index
    %4 = memref.load %arg2[%c0_2] : memref<1xf32, #tpu.memory_space<smem>>
    %5 = vector.broadcast %4 : f32 to vector<1x128xf32>
    %6 = arith.addf %3, %5 : vector<1x128xf32>
    %7 = math.tanh %6 : vector<1x128xf32>
    %cst = arith.constant 5.000000e-01 : f32
    %8 = vector.broadcast %cst : f32 to vector<1x128xf32>
    %9 = arith.mulf %8, %7 : vector<1x128xf32>
    %cst_3 = arith.constant 5.000000e-01 : f32
    %10 = vector.broadcast %cst_3 : f32 to vector<1x128xf32>
    %11 = arith.addf %9, %10 : vector<1x128xf32>
    %c0_4 = arith.constant 0 : index
    %c0_5 = arith.constant 0 : index
    %12 = vector.load %arg4[%c0_4, %c0_5] : memref<1x128xf32, #tpu.memory_space<vmem>>, vector<1x128xf32>
    tpu.vector_store %arg4[%c0_4, %c0_5], %11 {strides = array<i32>} : memref<1x128xf32, #tpu.memory_space<vmem>>, vector<1x128xf32>,
    return
  }
  func.func @transform_0(%arg0: i32) -> i32 {
    %c0_i32 = arith.constant 0 : i32
    %c0_i32_0 = arith.constant 0 : i32
    return %c0_i32 : i32
  }
  func.func @transform_1(%arg0: i32) -> i32 {
    %c0_i32 = arith.constant 0 : i32
    %c0_i32_0 = arith.constant 0 : i32
    return %c0_i32 : i32
  }
  func.func @transform_2(%arg0: i32) -> (i32, i32) {
    %c0_i32 = arith.constant 0 : i32
    %c0_i32_0 = arith.constant 0 : i32
    return %arg0, %c0_i32 : i32, i32
  }
  func.func @transform_3(%arg0: i32) -> (i32, i32) {
    %c0_i32 = arith.constant 0 : i32
    %c0_i32_0 = arith.constant 0 : i32
    return %arg0, %c0_i32 : i32, i32
  }
}

</mosaic_0001>

<llo_original>
// kernel: tpu_custom_call.1
$region0: #{tpu_custom_call.1}
  #allocation0 [shape = 'u32[]', space=smem, size = 0x4, offset = 0x4, fixed_abs, tag = 'smem constant byte address 0x4 - core index']
  #allocation1 [shape = 'u32[144,128]{1,0:T(1,128)}', space=vmem, size = 0x12000, scoped, tag = 'internal scratch']
  #allocation2 [shape = 'f32[1]{0:T(128)S(6)}', space=smem, size = 0x200, scoped, tag = 'scoped memory for tpu_custom_call.1']
  #allocation3 [shape = 'f32[1]{0:T(128)S(6)}', space=smem, size = 0x200, scoped, tag = 'scoped memory for tpu_custom_call.1']
  %s0 = inlined_call_operand.<no memory space> [shape: f32[1], index: 0, kind: input, shape index: {}]
  %s1 = inlined_call_operand.<no memory space> [shape: f32[1], index: 1, kind: input, shape index: {}]
  %s2 = inlined_call_operand.vmem [shape: f32[1,128], index: 2, kind: input, shape index: {}]
  %s3 = inlined_call_operand.hbm [shape: f32[1,128], index: 3, kind: output, shape index: {}]
  %s4 = sld [smem:[#allocation0]]
  $region22: #{tpu_custom_call.1} parent=0
    _
  %s6 = ssub.s32 1, %s4
  %s7 = scalar_select 0, %s6, %s4
  %8 = sst [smem:[#allocation2]] %s0
  %9 = sst [smem:[#allocation3]] %s1
  $region1: #{tpu_custom_call.1} parent=0
    #allocation4 [shape = 'u8[512]{0}', space=vmem, size = 0x400, scoped, tag = 'output window, operand 0, single buffered']
    #allocation5 [shape = 's32[1]{0}', space=sflag, size = 0x4, scoped, tag = 'scoped memory for tpu_custom_call.1']
    %10 = vsyncpa [#allocation5], 0
    // Predicated region
    $region2: #{tpu_custom_call.1} parent=1 // pred_check
      _
    $region3: #{tpu_custom_call.1} parent=1 // pred_check_branch
      %12 = sbr.rel (0) target = $region5
    $region4: #{tpu_custom_call.1} parent=1 // pred_region
      _
    $region5: #{tpu_custom_call.1} parent=1 // pred_fallthru
      _
    // Predicated region
    $region6: #{tpu_custom_call.1} parent=1 // pred_check
      _
    $region7: #{tpu_custom_call.1} parent=1 // pred_check_branch
      %14 = sbr.rel (0) target = $region9
    $region8: #{tpu_custom_call.1} parent=1 // pred_region
      _
    $region9: #{tpu_custom_call.1} parent=1 // pred_fallthru
      _
    // Predicated region
    $region10: #{tpu_custom_call.1} parent=1 // pred_check
      _
    $region11: #{tpu_custom_call.1} parent=1 // pred_check_branch
      %16 = sbr.rel (0) target = $region13
    $region12: #{tpu_custom_call.1} parent=1 // pred_region
      _
    $region13: #{tpu_custom_call.1} parent=1 // pred_fallthru
      _
    %v17 = vld [vmem:[%s2] sm:$0x1]
    %s18 = sld [smem:[#allocation2]]
    %v19 = vstv %s18
    %v20 = vmul.f32 %v17, %v19
    %s21 = sld [smem:[#allocation3]]
    %v22 = vstv %s21
    %v23 = vadd.f32 %v20, %v22
    %v24 = vtanh.pop %v23
    %v25 = vmul.f32 %v24, 0.5
    %v26 = vadd.f32 %v25, 0.5
    %27 = vst [vmem:[#allocation4] sm:$0x1] %v26
    // Predicated region
    $region14: #{tpu_custom_call.1} parent=1 // pred_check
      _
    $region15: #{tpu_custom_call.1} parent=1 // pred_check_branch
      %29 = sbr.rel (0) target = $region17
    $region16: #{tpu_custom_call.1} parent=1 // pred_region
      %s31 = ssub.s32 16, 16
      %32 = vsyncadd [#allocation5], %s31
      %s34 = sshll.u32 [#allocation4], 4
      %s35 = int_to_ptr.vmem [resolvable:$true] %s34
      %37 = dma.vmem_to_hbm [thread:$0]  %s35, 16, %s3, [#allocation5]
    $region17: #{tpu_custom_call.1} parent=1 // pred_fallthru
      _
    // Predicated region
    $region18: #{tpu_custom_call.1} parent=1 // pred_check
      _
    $region19: #{tpu_custom_call.1} parent=1 // pred_check_branch
      %39 = sbr.rel (0) target = $region21
    $region20: #{tpu_custom_call.1} parent=1 // pred_region
      %40 = dma.done [#allocation5], 16
    $region21: #{tpu_custom_call.1} parent=1 // pred_fallthru
      _
    %41 = vsyncpa [#allocation5], 1

</llo_original>
